<compile_context>
chip_gen: v7x
topology: tpu7x:2x2x1
jax: 0.10.0
libtpu: 0.0.40
codegen_flags: <defaults>
</compile_context>

<pallas_src>
import functools

import jax
import jax.numpy as jnp
from jax import lax
from jax.experimental import pallas as pl
from jax.experimental.pallas import tpu as pltpu


def _ts_corr_kernel(xj_ref, xk_ref, wsel_ref, o_ref, *, d):
    # xj_ref, xk_ref: (row_block, T)  native dtype (rows = flattened (batch, pair))
    # wsel_ref:       (T, w_pad)      f32 static 0/1 window-selection matrix
    # o_ref:          (row_block, w_pad) f32 (lane-dense; first w columns valid)
    xj = xj_ref[...].astype(jnp.float32)
    xk = xk_ref[...].astype(jnp.float32)
    wsel = wsel_ref[...]

    # Window sums as MXU matmuls against the static selector (lanes stay dense).
    s_j = jnp.dot(xj, wsel, preferred_element_type=jnp.float32)
    s_k = jnp.dot(xk, wsel, preferred_element_type=jnp.float32)
    s_jj = jnp.dot(xj * xj, wsel, preferred_element_type=jnp.float32)
    s_kk = jnp.dot(xk * xk, wsel, preferred_element_type=jnp.float32)
    s_jk = jnp.dot(xj * xk, wsel, preferred_element_type=jnp.float32)

    inv_d = jnp.float32(1.0 / d)
    inv_dm1 = jnp.float32(1.0 / (d - 1))
    m_j = s_j * inv_d
    m_k = s_k * inv_d
    # torch: cov uses .mean (divisor d); std uses unbiased divisor (d-1).
    cov = s_jk * inv_d - m_j * m_k
    var_j = (s_jj - jnp.float32(d) * m_j * m_j) * inv_dm1
    var_k = (s_kk - jnp.float32(d) * m_k * m_k) * inv_dm1
    # EUP rsqrt path (cov / (std_j * std_k) == cov * rsqrt(var_j * var_k)).
    o_ref[...] = cov * lax.rsqrt(var_j * var_k)


def ts_corr(X, d=10, stride=10):
    """X: (batch, n, T) -> Z: (batch, n*(n-1)//2, w) float32."""
    B, n, T = X.shape
    assert d >= 2, "d must be >= 2 (unbiased std divides by d-1)"
    assert T >= d, "T must be >= d"
    w = (T - d) // stride + 1          # integer division (no float rounding)
    h = n * (n - 1) // 2

    # Pair indices in torch ordering: (0,1),(0,2),...,(0,n-1),(1,2),...,(n-2,n-1)
    jj, kk = [], []
    for j in range(n - 1):
        for k in range(j + 1, n):
            jj.append(j)
            kk.append(k)
    jj = jnp.asarray(jj, dtype=jnp.int32)
    kk = jnp.asarray(kk, dtype=jnp.int32)

    # Gather pair rows; keep native dtype (cast happens in-kernel after the DMA).
    XJ = X[:, jj, :].reshape(B * h, T)
    XK = X[:, kk, :].reshape(B * h, T)

    # Lane-dense padded window count (>= 128, multiple of 128).
    w_pad = ((w + 127) // 128) * 128

    # Static window-selection / summation matrix (T, w_pad), built with iota.
    t_idx = jnp.arange(T, dtype=jnp.int32)[:, None]
    i_idx = jnp.arange(w_pad, dtype=jnp.int32)[None, :]
    start = i_idx * stride
    wsel = ((i_idx < w) & (t_idx >= start) & (t_idx < start + d)).astype(jnp.float32)

    R = B * h
    itemsize = jnp.dtype(X.dtype).itemsize
    # Large row tile, sized against a conservative VMEM budget
    # (2 inputs x 2 pipeline buffers + lane-dense output), safe on v7x's 64 MiB.
    budget = 16 * 1024 * 1024
    bytes_per_row = 2 * (2 * T * itemsize) + 2 * w_pad * 4
    rb = budget // max(bytes_per_row, 1)
    rb = max(16, min(1024, (rb // 16) * 16))
    rb = min(rb, ((R + 15) // 16) * 16)
    R_pad = ((R + rb - 1) // rb) * rb
    if R_pad != R:
        XJ = jnp.pad(XJ, ((0, R_pad - R), (0, 0)))
        XK = jnp.pad(XK, ((0, R_pad - R), (0, 0)))

    out = pl.pallas_call(
        functools.partial(_ts_corr_kernel, d=d),
        out_shape=jax.ShapeDtypeStruct((R_pad, w_pad), jnp.float32),
        grid=(R_pad // rb,),
        in_specs=[
            pl.BlockSpec((rb, T), lambda r: (r, 0)),
            pl.BlockSpec((rb, T), lambda r: (r, 0)),
            pl.BlockSpec((T, w_pad), lambda r: (0, 0)),
        ],
        out_specs=pl.BlockSpec((rb, w_pad), lambda r: (r, 0)),
        compiler_params=pltpu.CompilerParams(
            dimension_semantics=("parallel",),
            vmem_limit_bytes=48 * 1024 * 1024,
        ),
    )(XJ, XK, wsel)

    # Drop row/lane padding and restore (batch, pair, window) layout.
    return out[:R, :w].reshape(B, h, w)


def _reference(X, d=10, stride=10):
    """Pure-JAX transliteration of the PyTorch ts_corr.forward."""
    X = X.astype(jnp.float32)
    B, n, T = X.shape
    w = (T - d) // stride + 1
    cols = []
    for i in range(w):
        s = i * stride
        win = X[:, :, s:s + d]
        rows = []
        for j in range(n - 1):
            x = win[:, j:j + 1, :]
            y = win[:, j + 1:, :]
            xm = jnp.mean(x, axis=2, keepdims=True)
            ym = jnp.mean(y, axis=2, keepdims=True)
            xs = jnp.sqrt(jnp.sum((x - xm) ** 2, axis=2, keepdims=True) / (d - 1))
            ys = jnp.sqrt(jnp.sum((y - ym) ** 2, axis=2, keepdims=True) / (d - 1))
            cov = jnp.mean((x - xm) * (y - ym), axis=2)
            rows.append(cov / (xs * ys)[..., 0])
        cols.append(jnp.concatenate(rows, axis=1))
    return jnp.stack(cols, axis=2)


if __name__ == "__main__":
    key = jax.random.PRNGKey(0)
    B, n, T = 2, 4, 64           # small shapes: batch=2, n=4 series, T=64 steps
    d, stride = 10, 10
    X = jax.random.normal(key, (B, n, T), dtype=jnp.float32)

    Z = ts_corr(X, d=d, stride=stride)
    Z = jax.block_until_ready(Z)

    Z_ref = _reference(X, d=d, stride=stride)
    w = (T - d) // stride + 1
    h = n * (n - 1) // 2
    assert Z.shape == (B, h, w), Z.shape
    err = float(jnp.max(jnp.abs(Z - Z_ref)))
    assert jnp.allclose(Z, Z_ref, atol=1e-3, rtol=1e-3), f"mismatch, max abs err {err}"

    print("KERNEL_OK")
</pallas_src>

<mosaic_0001>
module attributes {stable_mosaic.version = 11 : i64} {
  func.func @_ts_corr_kernel(%arg0: i32, %arg1: memref<16x64xf32, #tpu.memory_space<vmem>>, %arg2: memref<16x64xf32, #tpu.memory_space<vmem>>, %arg3: memref<64x128xf32, #tpu.memory_space<vmem>>, %arg4: memref<16x128xf32, #tpu.memory_space<vmem>>) attributes {dimension_semantics = [#tpu.dimension_semantics<parallel>], iteration_bounds = array<i64: 1>, scalar_prefetch = 0 : i64, scratch_operands = 0 : i64, tpu.core_type = #tpu.core_type<tc>, window_params = [{transform_indices = @transform_0, window_bounds = array<i64: 16, 64>}, {transform_indices = @transform_1, window_bounds = array<i64: 16, 64>}, {pipeline_mode = #tpu.pipeline_mode<synchronous>, transform_indices = @transform_2, window_bounds = array<i64: 64, 128>}, {transform_indices = @transform_3, window_bounds = array<i64: 16, 128>}]} {
    %c0 = arith.constant 0 : index
    %c0_0 = arith.constant 0 : index
    %0 = vector.load %arg1[%c0, %c0_0] : memref<16x64xf32, #tpu.memory_space<vmem>>, vector<16x64xf32>
    %c0_1 = arith.constant 0 : index
    %c0_2 = arith.constant 0 : index
    %1 = vector.load %arg2[%c0_1, %c0_2] : memref<16x64xf32, #tpu.memory_space<vmem>>, vector<16x64xf32>
    %c0_3 = arith.constant 0 : index
    %c0_4 = arith.constant 0 : index
    %2 = vector.load %arg3[%c0_3, %c0_4] : memref<64x128xf32, #tpu.memory_space<vmem>>, vector<64x128xf32>
    %cst = arith.constant dense<0.000000e+00> : vector<16x128xf32>
    %3 = tpu.matmul %0, %2, %cst {dimension_numbers = #tpu.dot_dimension_numbers<[1], [0], [0], [1], [0, 0, 1, 1], [], []>} : vector<16x64xf32>, vector<64x128xf32>, vector<16x128xf32> -> vector<16x128xf32>
    %cst_5 = arith.constant dense<0.000000e+00> : vector<16x128xf32>
    %4 = tpu.matmul %1, %2, %cst_5 {dimension_numbers = #tpu.dot_dimension_numbers<[1], [0], [0], [1], [0, 0, 1, 1], [], []>} : vector<16x64xf32>, vector<64x128xf32>, vector<16x128xf32> -> vector<16x128xf32>
    %5 = arith.mulf %0, %0 : vector<16x64xf32>
    %cst_6 = arith.constant dense<0.000000e+00> : vector<16x128xf32>
    %6 = tpu.matmul %5, %2, %cst_6 {dimension_numbers = #tpu.dot_dimension_numbers<[1], [0], [0], [1], [0, 0, 1, 1], [], []>} : vector<16x64xf32>, vector<64x128xf32>, vector<16x128xf32> -> vector<16x128xf32>
    %7 = arith.mulf %1, %1 : vector<16x64xf32>
    %cst_7 = arith.constant dense<0.000000e+00> : vector<16x128xf32>
    %8 = tpu.matmul %7, %2, %cst_7 {dimension_numbers = #tpu.dot_dimension_numbers<[1], [0], [0], [1], [0, 0, 1, 1], [], []>} : vector<16x64xf32>, vector<64x128xf32>, vector<16x128xf32> -> vector<16x128xf32>
    %9 = arith.mulf %0, %1 : vector<16x64xf32>
    %cst_8 = arith.constant dense<0.000000e+00> : vector<16x128xf32>
    %10 = tpu.matmul %9, %2, %cst_8 {dimension_numbers = #tpu.dot_dimension_numbers<[1], [0], [0], [1], [0, 0, 1, 1], [], []>} : vector<16x64xf32>, vector<64x128xf32>, vector<16x128xf32> -> vector<16x128xf32>
    %cst_9 = arith.constant 1.000000e-01 : f32
    %11 = vector.broadcast %cst_9 : f32 to vector<16x128xf32>
    %12 = arith.mulf %3, %11 : vector<16x128xf32>
    %cst_10 = arith.constant 1.000000e-01 : f32
    %13 = vector.broadcast %cst_10 : f32 to vector<16x128xf32>
    %14 = arith.mulf %4, %13 : vector<16x128xf32>
    %cst_11 = arith.constant 1.000000e-01 : f32
    %15 = vector.broadcast %cst_11 : f32 to vector<16x128xf32>
    %16 = arith.mulf %10, %15 : vector<16x128xf32>
    %17 = arith.mulf %12, %14 : vector<16x128xf32>
    %18 = arith.subf %16, %17 : vector<16x128xf32>
    %cst_12 = arith.constant 1.000000e+01 : f32
    %19 = vector.broadcast %cst_12 : f32 to vector<16x128xf32>
    %20 = arith.mulf %19, %12 : vector<16x128xf32>
    %21 = arith.mulf %20, %12 : vector<16x128xf32>
    %22 = arith.subf %6, %21 : vector<16x128xf32>
    %cst_13 = arith.constant 0.111111112 : f32
    %23 = vector.broadcast %cst_13 : f32 to vector<16x128xf32>
    %24 = arith.mulf %22, %23 : vector<16x128xf32>
    %cst_14 = arith.constant 1.000000e+01 : f32
    %25 = vector.broadcast %cst_14 : f32 to vector<16x128xf32>
    %26 = arith.mulf %25, %14 : vector<16x128xf32>
    %27 = arith.mulf %26, %14 : vector<16x128xf32>
    %28 = arith.subf %8, %27 : vector<16x128xf32>
    %cst_15 = arith.constant 0.111111112 : f32
    %29 = vector.broadcast %cst_15 : f32 to vector<16x128xf32>
    %30 = arith.mulf %28, %29 : vector<16x128xf32>
    %31 = arith.mulf %24, %30 : vector<16x128xf32>
    %32 = math.rsqrt %31 : vector<16x128xf32>
    %33 = arith.mulf %18, %32 : vector<16x128xf32>
    %c0_16 = arith.constant 0 : index
    %c0_17 = arith.constant 0 : index
    %34 = vector.load %arg4[%c0_16, %c0_17] : memref<16x128xf32, #tpu.memory_space<vmem>>, vector<16x128xf32>
    tpu.vector_store %arg4[%c0_16, %c0_17], %33 {strides = array<i32>} : memref<16x128xf32, #tpu.memory_space<vmem>>, vector<16x128xf32>,
    return
  }
  func.func @transform_0(%arg0: i32) -> (i32, i32) {
    %c0_i32 = arith.constant 0 : i32
    %c0_i32_0 = arith.constant 0 : i32
    return %arg0, %c0_i32 : i32, i32
  }
  func.func @transform_1(%arg0: i32) -> (i32, i32) {
    %c0_i32 = arith.constant 0 : i32
    %c0_i32_0 = arith.constant 0 : i32
    return %arg0, %c0_i32 : i32, i32
  }
  func.func @transform_2(%arg0: i32) -> (i32, i32) {
    %c0_i32 = arith.constant 0 : i32
    %c0_i32_0 = arith.constant 0 : i32
    %c0_i32_1 = arith.constant 0 : i32
    return %c0_i32, %c0_i32_0 : i32, i32
  }
  func.func @transform_3(%arg0: i32) -> (i32, i32) {
    %c0_i32 = arith.constant 0 : i32
    %c0_i32_0 = arith.constant 0 : i32
    return %arg0, %c0_i32 : i32, i32
  }
}

</mosaic_0001>

<llo_original>
// kernel: tpu_custom_call.1
$region0: #{tpu_custom_call.1}
  #allocation0 [shape = 'u32[]', space=smem, size = 0x4, offset = 0x4, fixed_abs, tag = 'smem constant byte address 0x4 - core index']
  #allocation1 [shape = 'u32[144,128]{1,0:T(1,128)}', space=vmem, size = 0x12000, scoped, tag = 'internal scratch']
  %s0 = inlined_call_operand.hbm [shape: f32[16,64], index: 0, kind: input, shape index: {}]
  %s1 = inlined_call_operand.hbm [shape: f32[16,64], index: 1, kind: input, shape index: {}]
  %s2 = inlined_call_operand.hbm [shape: f32[64,128], index: 2, kind: input, shape index: {}]
  %s3 = inlined_call_operand.hbm [shape: f32[16,128], index: 3, kind: output, shape index: {}]
  %s4 = sld [smem:[#allocation0]]
  $region34: #{tpu_custom_call.1} parent=0
    _
  %s6 = ssub.s32 1, %s4
  %s7 = scalar_select 0, %s6, %s4
  $region1: #{tpu_custom_call.1} parent=0
    #allocation2 [shape = 'u8[8192]{0}', space=vmem, size = 0x2000, scoped, tag = 'input window, operand 0, single buffered']
    #allocation3 [shape = 's32[1]{0}', space=sflag, size = 0x4, scoped, tag = 'scoped memory for tpu_custom_call.1']
    #allocation4 [shape = 's32[1]{0}', space=sflag, size = 0x4, scoped, tag = 'scoped memory for tpu_custom_call.1']
    #allocation5 [shape = 'u8[8192]{0}', space=vmem, size = 0x2000, scoped, tag = 'input window, operand 1, single buffered']
    #allocation6 [shape = 's32[1]{0}', space=sflag, size = 0x4, scoped, tag = 'scoped memory for tpu_custom_call.1']
    #allocation7 [shape = 'u8[32768]{0}', space=vmem, size = 0x8000, scoped, tag = 'input window, operand 2, single buffered']
    #allocation8 [shape = 'u8[8192]{0}', space=vmem, size = 0x2000, scoped, tag = 'output window, operand 0, single buffered']
    %8 = vsyncpa [#allocation3], 0
    %9 = vsyncpa [#allocation6], 0
    %10 = vsyncpa [#allocation4], 0
    // Predicated region
    $region2: #{tpu_custom_call.1} parent=1 // pred_check
      _
    $region3: #{tpu_custom_call.1} parent=1 // pred_check_branch
      %12 = sbr.rel (0) target = $region5
    $region4: #{tpu_custom_call.1} parent=1 // pred_region
      %s14 = ssub.s32 256, 256
      %15 = vsyncadd [#allocation3], %s14
      %s16 = sshll.u32 [#allocation2], 4
      %s17 = int_to_ptr.vmem [resolvable:$true] %s16
      %22 = dma.hbm_to_vmem [thread:$0]  %s0, 256, %s17, [#allocation3], 128, 128, 8
    $region5: #{tpu_custom_call.1} parent=1 // pred_fallthru
      _
    // Predicated region
    $region6: #{tpu_custom_call.1} parent=1 // pred_check
      _
    $region7: #{tpu_custom_call.1} parent=1 // pred_check_branch
      %24 = sbr.rel (0) target = $region9
    $region8: #{tpu_custom_call.1} parent=1 // pred_region
      %s26 = ssub.s32 256, 256
      %27 = vsyncadd [#allocation6], %s26
      %s28 = sshll.u32 [#allocation5], 4
      %s29 = int_to_ptr.vmem [resolvable:$true] %s28
      %34 = dma.hbm_to_vmem [thread:$0]  %s1, 256, %s29, [#allocation6], 128, 128, 8
    $region9: #{tpu_custom_call.1} parent=1 // pred_fallthru
      _
    // Predicated region
    $region10: #{tpu_custom_call.1} parent=1 // pred_check
      _
    $region11: #{tpu_custom_call.1} parent=1 // pred_check_branch
      %36 = sbr.rel (0) target = $region13
    $region12: #{tpu_custom_call.1} parent=1 // pred_region
      %s38 = ssub.s32 1024, 1024
      %39 = vsyncadd [#allocation6], %s38
      %s40 = sshll.u32 [#allocation7], 4
      %s41 = int_to_ptr.vmem [resolvable:$true] %s40
      %46 = dma.hbm_to_vmem [thread:$0]  %s2, 1024, %s41, [#allocation6], 128, 128, 8
    $region13: #{tpu_custom_call.1} parent=1 // pred_fallthru
      _
    // Predicated region
    $region14: #{tpu_custom_call.1} parent=1 // pred_check
      _
    $region15: #{tpu_custom_call.1} parent=1 // pred_check_branch
      %48 = sbr.rel (0) target = $region17
    $region16: #{tpu_custom_call.1} parent=1 // pred_region
      %49 = dma.done [#allocation3], 256
    $region17: #{tpu_custom_call.1} parent=1 // pred_fallthru
      _
    // Predicated region
    $region18: #{tpu_custom_call.1} parent=1 // pred_check
      _
    $region19: #{tpu_custom_call.1} parent=1 // pred_check_branch
      %51 = sbr.rel (0) target = $region21
    $region20: #{tpu_custom_call.1} parent=1 // pred_region
      %52 = dma.done [#allocation6], 256
    $region21: #{tpu_custom_call.1} parent=1 // pred_fallthru
      _
    // Predicated region
    $region22: #{tpu_custom_call.1} parent=1 // pred_check
      _
    $region23: #{tpu_custom_call.1} parent=1 // pred_check_branch
      %54 = sbr.rel (0) target = $region25
    $region24: #{tpu_custom_call.1} parent=1 // pred_region
      %55 = dma.done [#allocation6], 1024
    $region25: #{tpu_custom_call.1} parent=1 // pred_fallthru
      _
    %v56 = vld [vmem:[#allocation2] sm:$0xff]
    %v57 = vld [vmem:[#allocation2 + $0x8] sm:$0xff]
    %v58 = vld [vmem:[#allocation5] sm:$0xff]
    %v59 = vld [vmem:[#allocation5 + $0x8] sm:$0xff]
    %v60 = vld [vmem:[#allocation7] sm:$0xff]
    %v61 = vld [vmem:[#allocation7 + $0x8] sm:$0xff]
    %v62 = vld [vmem:[#allocation7 + $0x10] sm:$0xff]
    %v63 = vld [vmem:[#allocation7 + $0x18] sm:$0xff]
    %v64 = vld [vmem:[#allocation7 + $0x20] sm:$0xff]
    %v65 = vld [vmem:[#allocation7 + $0x28] sm:$0xff]
    %v66 = vld [vmem:[#allocation7 + $0x30] sm:$0xff]
    %v67 = vld [vmem:[#allocation7 + $0x38] sm:$0xff]
    %vm68 = vcmask 523264
    %v70 = vsel %vm68, %v56, 0
    %v73 = vsel %vm68, %v57, 0
    %75 = vmatprep.subr.mxu0 0.0
    %76 = vmatpush1.msra.mxu0 %v60
    %77 = vmatprep.subr.mxu0 0.0
    %78 = vmatpush1.msra.mxu0 %v61
    %79 = vmatprep.subr.mxu0 0.0
    %80 = vmatpush1.msra.mxu0 %v62
    %81 = vmatprep.subr.mxu0 0.0
    %82 = vmatpush1.msra.mxu0 %v63
    %83 = vmatprep.subr.mxu0 0.0
    %84 = vmatpush1.msra.mxu0 %v64
    %85 = vmatprep.subr.mxu0 0.0
    %86 = vmatpush1.msra.mxu0 %v65
    %87 = vmatprep.subr.mxu0 0.0
    %88 = vmatpush1.msra.mxu0 %v66
    %89 = vmatprep.subr.mxu0 0.0
    %90 = vmatpush1.msra.mxu0 %v67
    %91 = vmatprep.subr.mxu0 0.0
    %92 = vmatpush1.msra.mxu0 0.0
    %93 = vmatprep.subr.mxu0 0.0
    %94 = vmatpush1.msra.mxu0 0.0
    %95 = vmatprep.subr.mxu0 0.0
    %96 = vmatpush1.msra.mxu0 0.0
    %97 = vmatprep.subr.mxu0 0.0
    %98 = vmatpush1.msra.mxu0 0.0
    %99 = vmatprep.subr.mxu0 0.0
    %100 = vmatpush1.msra.mxu0 0.0
    %101 = vmatprep.subr.mxu0 0.0
    %102 = vmatpush1.msra.mxu0 0.0
    %103 = vmatprep.subr.mxu0 0.0
    %104 = vmatpush1.msra.mxu0 0.0
    %105 = vmatprep.subr.mxu0 0.0
    %106 = vmatpush1.msra.mxu0 0.0
    %107 = vmatprep.subr.mxu0 0.0
    %108 = vmatpush1.msra.mxu0 0.0
    %109 = vmatprep.subr.mxu0 0.0
    %110 = vmatpush1.msra.mxu0 0.0
    %111 = vmatprep.subr.mxu0 0.0
    %112 = vmatpush1.msra.mxu0 0.0
    %113 = vmatprep.subr.mxu0 0.0
    %114 = vmatpush1.msra.mxu0 0.0
    %115 = vmatprep.subr.mxu0 0.0
    %116 = vmatpush1.msra.mxu0 0.0
    %117 = vmatprep.subr.mxu0 0.0
    %118 = vmatpush1.msra.mxu0 0.0
    %119 = vmatprep.subr.mxu0 0.0
    %120 = vmatpush1.msra.mxu0 0.0
    %121 = vmatprep.subr.mxu0 0.0
    %122 = vmatpush1.msra.mxu0 0.0
    %123 = vmatprep.subr.mxu0 0.0
    %124 = vmatpush1.msra.mxu0 0.0
    %125 = vmatprep.subr.mxu0 0.0
    %126 = vmatpush1.msra.mxu0 0.0
    %127 = vmatprep.subr.mxu0 0.0
    %128 = vmatpush1.msra.mxu0 0.0
    %129 = vmatprep.subr.mxu0 0.0
    %130 = vmatpush1.msra.mxu0 0.0
    %131 = vmatprep.subr.mxu0 0.0
    %132 = vmatpush1.msra.mxu0 0.0
    %133 = vmatprep.subr.mxu0 0.0
    %134 = vmatpush1.msra.mxu0 0.0
    %135 = vmatprep.subr.mxu0 0.0
    %136 = vmatpush1.msra.mxu0 0.0
    %137 = vmatprep.subr.mxu0 0.0
    %138 = vmatpush1.msra.mxu0 0.0
    %139 = vmatprep.mubr.f32.mxu0 0.0
    %140 = vmatmul.mubr.f32.gmra.mrb[0].mxu0 %v70
    %v141 = vpop.f32.mrb[0].mxu0
    %v142 = vadd.f32 0.0, %v141
    %v143 = vpop.f32.mrb[0].mxu0
    %144 = vmatprep.mubr.f32.mxu0 0.0
    %145 = vmatmul.mubr.f32.gmra.mrb[0].mxu0 %v73
    %v146 = vpop.f32.mrb[0].mxu0
    %v147 = vadd.f32 0.0, %v146
    %v148 = vpop.f32.mrb[0].mxu0
    %149 = vdwg.mxu0
    %v151 = vsel %vm68, %v58, 0
    %v154 = vsel %vm68, %v59, 0
    %156 = vmatprep.subr.mxu0 0.0
    %157 = vmatpush1.msra.mxu0 %v60
    %158 = vmatprep.subr.mxu0 0.0
    %159 = vmatpush1.msra.mxu0 %v61
    %160 = vmatprep.subr.mxu0 0.0
    %161 = vmatpush1.msra.mxu0 %v62
    %162 = vmatprep.subr.mxu0 0.0
    %163 = vmatpush1.msra.mxu0 %v63
    %164 = vmatprep.subr.mxu0 0.0
    %165 = vmatpush1.msra.mxu0 %v64
    %166 = vmatprep.subr.mxu0 0.0
    %167 = vmatpush1.msra.mxu0 %v65
    %168 = vmatprep.subr.mxu0 0.0
    %169 = vmatpush1.msra.mxu0 %v66
    %170 = vmatprep.subr.mxu0 0.0
    %171 = vmatpush1.msra.mxu0 %v67
    %172 = vmatprep.subr.mxu0 0.0
    %173 = vmatpush1.msra.mxu0 0.0
    %174 = vmatprep.subr.mxu0 0.0
    %175 = vmatpush1.msra.mxu0 0.0
    %176 = vmatprep.subr.mxu0 0.0
    %177 = vmatpush1.msra.mxu0 0.0
    %178 = vmatprep.subr.mxu0 0.0
    %179 = vmatpush1.msra.mxu0 0.0
    %180 = vmatprep.subr.mxu0 0.0
    %181 = vmatpush1.msra.mxu0 0.0
    %182 = vmatprep.subr.mxu0 0.0
    %183 = vmatpush1.msra.mxu0 0.0
    %184 = vmatprep.subr.mxu0 0.0
    %185 = vmatpush1.msra.mxu0 0.0
    %186 = vmatprep.subr.mxu0 0.0
    %187 = vmatpush1.msra.mxu0 0.0
    %188 = vmatprep.subr.mxu0 0.0
    %189 = vmatpush1.msra.mxu0 0.0
    %190 = vmatprep.subr.mxu0 0.0
    %191 = vmatpush1.msra.mxu0 0.0
    %192 = vmatprep.subr.mxu0 0.0
    %193 = vmatpush1.msra.mxu0 0.0
    %194 = vmatprep.subr.mxu0 0.0
    %195 = vmatpush1.msra.mxu0 0.0
    %196 = vmatprep.subr.mxu0 0.0
    %197 = vmatpush1.msra.mxu0 0.0
    %198 = vmatprep.subr.mxu0 0.0
    %199 = vmatpush1.msra.mxu0 0.0
    %200 = vmatprep.subr.mxu0 0.0
    %201 = vmatpush1.msra.mxu0 0.0
    %202 = vmatprep.subr.mxu0 0.0
    %203 = vmatpush1.msra.mxu0 0.0
    %204 = vmatprep.subr.mxu0 0.0
    %205 = vmatpush1.msra.mxu0 0.0
    %206 = vmatprep.subr.mxu0 0.0
    %207 = vmatpush1.msra.mxu0 0.0
    %208 = vmatprep.subr.mxu0 0.0
    %209 = vmatpush1.msra.mxu0 0.0
    %210 = vmatprep.subr.mxu0 0.0
    %211 = vmatpush1.msra.mxu0 0.0
    %212 = vmatprep.subr.mxu0 0.0
    %213 = vmatpush1.msra.mxu0 0.0
    %214 = vmatprep.subr.mxu0 0.0
    %215 = vmatpush1.msra.mxu0 0.0
    %216 = vmatprep.subr.mxu0 0.0
    %217 = vmatpush1.msra.mxu0 0.0
    %218 = vmatprep.subr.mxu0 0.0
    %219 = vmatpush1.msra.mxu0 0.0
    %220 = vmatprep.mubr.f32.mxu0 0.0
    %221 = vmatmul.mubr.f32.gmra.mrb[0].mxu0 %v151
    %v222 = vpop.f32.mrb[0].mxu0
    %v223 = vadd.f32 0.0, %v222
    %v224 = vpop.f32.mrb[0].mxu0
    %225 = vmatprep.mubr.f32.mxu0 0.0
    %226 = vmatmul.mubr.f32.gmra.mrb[0].mxu0 %v154
    %v227 = vpop.f32.mrb[0].mxu0
    %v228 = vadd.f32 0.0, %v227
    %v229 = vpop.f32.mrb[0].mxu0
    %230 = vdwg.mxu0
    %v231 = vmul.f32 %v56, %v56
    %v232 = vmul.f32 %v57, %v57
    %v234 = vsel %vm68, %v231, 0
    %v237 = vsel %vm68, %v232, 0
    %239 = vmatprep.subr.mxu0 0.0
    %240 = vmatpush1.msra.mxu0 %v60
    %241 = vmatprep.subr.mxu0 0.0
    %242 = vmatpush1.msra.mxu0 %v61
    %243 = vmatprep.subr.mxu0 0.0
    %244 = vmatpush1.msra.mxu0 %v62
    %245 = vmatprep.subr.mxu0 0.0
    %246 = vmatpush1.msra.mxu0 %v63
    %247 = vmatprep.subr.mxu0 0.0
    %248 = vmatpush1.msra.mxu0 %v64
    %249 = vmatprep.subr.mxu0 0.0
    %250 = vmatpush1.msra.mxu0 %v65
    %251 = vmatprep.subr.mxu0 0.0
    %252 = vmatpush1.msra.mxu0 %v66
    %253 = vmatprep.subr.mxu0 0.0
    %254 = vmatpush1.msra.mxu0 %v67
    %255 = vmatprep.subr.mxu0 0.0
    %256 = vmatpush1.msra.mxu0 0.0
    %257 = vmatprep.subr.mxu0 0.0
    %258 = vmatpush1.msra.mxu0 0.0
    %259 = vmatprep.subr.mxu0 0.0
    %260 = vmatpush1.msra.mxu0 0.0
    %261 = vmatprep.subr.mxu0 0.0
    %262 = vmatpush1.msra.mxu0 0.0
    %263 = vmatprep.subr.mxu0 0.0
    %264 = vmatpush1.msra.mxu0 0.0
    %265 = vmatprep.subr.mxu0 0.0
    %266 = vmatpush1.msra.mxu0 0.0
    %267 = vmatprep.subr.mxu0 0.0
    %268 = vmatpush1.msra.mxu0 0.0
    %269 = vmatprep.subr.mxu0 0.0
    %270 = vmatpush1.msra.mxu0 0.0
    %271 = vmatprep.subr.mxu0 0.0
    %272 = vmatpush1.msra.mxu0 0.0
    %273 = vmatprep.subr.mxu0 0.0
    %274 = vmatpush1.msra.mxu0 0.0
    %275 = vmatprep.subr.mxu0 0.0
    %276 = vmatpush1.msra.mxu0 0.0
    %277 = vmatprep.subr.mxu0 0.0
    %278 = vmatpush1.msra.mxu0 0.0
    %279 = vmatprep.subr.mxu0 0.0
    %280 = vmatpush1.msra.mxu0 0.0
    %281 = vmatprep.subr.mxu0 0.0
    %282 = vmatpush1.msra.mxu0 0.0
    %283 = vmatprep.subr.mxu0 0.0
    %284 = vmatpush1.msra.mxu0 0.0
    %285 = vmatprep.subr.mxu0 0.0
    %286 = vmatpush1.msra.mxu0 0.0
    %287 = vmatprep.subr.mxu0 0.0
    %288 = vmatpush1.msra.mxu0 0.0
    %289 = vmatprep.subr.mxu0 0.0
    %290 = vmatpush1.msra.mxu0 0.0
    %291 = vmatprep.subr.mxu0 0.0
    %292 = vmatpush1.msra.mxu0 0.0
    %293 = vmatprep.subr.mxu0 0.0
    %294 = vmatpush1.msra.mxu0 0.0
    %295 = vmatprep.subr.mxu0 0.0
    %296 = vmatpush1.msra.mxu0 0.0
    %297 = vmatprep.subr.mxu0 0.0
    %298 = vmatpush1.msra.mxu0 0.0
    %299 = vmatprep.subr.mxu0 0.0
    %300 = vmatpush1.msra.mxu0 0.0
    %301 = vmatprep.subr.mxu0 0.0
    %302 = vmatpush1.msra.mxu0 0.0
    %303 = vmatprep.mubr.f32.mxu0 0.0
    %304 = vmatmul.mubr.f32.gmra.mrb[0].mxu0 %v234
    %v305 = vpop.f32.mrb[0].mxu0
    %v306 = vadd.f32 0.0, %v305
    %v307 = vpop.f32.mrb[0].mxu0
    %308 = vmatprep.mubr.f32.mxu0 0.0
    %309 = vmatmul.mubr.f32.gmra.mrb[0].mxu0 %v237
    %v310 = vpop.f32.mrb[0].mxu0
    %v311 = vadd.f32 0.0, %v310
    %v312 = vpop.f32.mrb[0].mxu0
    %313 = vdwg.mxu0
    %v314 = vmul.f32 %v58, %v58
    %v315 = vmul.f32 %v59, %v59
    %v317 = vsel %vm68, %v314, 0
    %v320 = vsel %vm68, %v315, 0
    %322 = vmatprep.subr.mxu0 0.0
    %323 = vmatpush1.msra.mxu0 %v60
    %324 = vmatprep.subr.mxu0 0.0
    %325 = vmatpush1.msra.mxu0 %v61
    %326 = vmatprep.subr.mxu0 0.0
    %327 = vmatpush1.msra.mxu0 %v62
    %328 = vmatprep.subr.mxu0 0.0
    %329 = vmatpush1.msra.mxu0 %v63
    %330 = vmatprep.subr.mxu0 0.0
    %331 = vmatpush1.msra.mxu0 %v64
    %332 = vmatprep.subr.mxu0 0.0
    %333 = vmatpush1.msra.mxu0 %v65
    %334 = vmatprep.subr.mxu0 0.0
    %335 = vmatpush1.msra.mxu0 %v66
    %336 = vmatprep.subr.mxu0 0.0
    %337 = vmatpush1.msra.mxu0 %v67
    %338 = vmatprep.subr.mxu0 0.0
    %339 = vmatpush1.msra.mxu0 0.0
    %340 = vmatprep.subr.mxu0 0.0
    %341 = vmatpush1.msra.mxu0 0.0
    %342 = vmatprep.subr.mxu0 0.0
    %343 = vmatpush1.msra.mxu0 0.0
    %344 = vmatprep.subr.mxu0 0.0
    %345 = vmatpush1.msra.mxu0 0.0
    %346 = vmatprep.subr.mxu0 0.0
    %347 = vmatpush1.msra.mxu0 0.0
    %348 = vmatprep.subr.mxu0 0.0
    %349 = vmatpush1.msra.mxu0 0.0
    %350 = vmatprep.subr.mxu0 0.0
    %351 = vmatpush1.msra.mxu0 0.0
    %352 = vmatprep.subr.mxu0 0.0
    %353 = vmatpush1.msra.mxu0 0.0
    %354 = vmatprep.subr.mxu0 0.0
    %355 = vmatpush1.msra.mxu0 0.0
    %356 = vmatprep.subr.mxu0 0.0
    %357 = vmatpush1.msra.mxu0 0.0
    %358 = vmatprep.subr.mxu0 0.0
    %359 = vmatpush1.msra.mxu0 0.0
    %360 = vmatprep.subr.mxu0 0.0
    %361 = vmatpush1.msra.mxu0 0.0
    %362 = vmatprep.subr.mxu0 0.0
    %363 = vmatpush1.msra.mxu0 0.0
    %364 = vmatprep.subr.mxu0 0.0
    %365 = vmatpush1.msra.mxu0 0.0
    %366 = vmatprep.subr.mxu0 0.0
    %367 = vmatpush1.msra.mxu0 0.0
    %368 = vmatprep.subr.mxu0 0.0
    %369 = vmatpush1.msra.mxu0 0.0
    %370 = vmatprep.subr.mxu0 0.0
    %371 = vmatpush1.msra.mxu0 0.0
    %372 = vmatprep.subr.mxu0 0.0
    %373 = vmatpush1.msra.mxu0 0.0
    %374 = vmatprep.subr.mxu0 0.0
    %375 = vmatpush1.msra.mxu0 0.0
    %376 = vmatprep.subr.mxu0 0.0
    %377 = vmatpush1.msra.mxu0 0.0
    %378 = vmatprep.subr.mxu0 0.0
    %379 = vmatpush1.msra.mxu0 0.0
    %380 = vmatprep.subr.mxu0 0.0
    %381 = vmatpush1.msra.mxu0 0.0
    %382 = vmatprep.subr.mxu0 0.0
    %383 = vmatpush1.msra.mxu0 0.0
    %384 = vmatprep.subr.mxu0 0.0
    %385 = vmatpush1.msra.mxu0 0.0
    %386 = vmatprep.mubr.f32.mxu0 0.0
    %387 = vmatmul.mubr.f32.gmra.mrb[0].mxu0 %v317
    %v388 = vpop.f32.mrb[0].mxu0
    %v389 = vadd.f32 0.0, %v388
    %v390 = vpop.f32.mrb[0].mxu0
    %391 = vmatprep.mubr.f32.mxu0 0.0
    %392 = vmatmul.mubr.f32.gmra.mrb[0].mxu0 %v320
    %v393 = vpop.f32.mrb[0].mxu0
    %v394 = vadd.f32 0.0, %v393
    %v395 = vpop.f32.mrb[0].mxu0
    %396 = vdwg.mxu0
    %v397 = vmul.f32 %v56, %v58
    %v398 = vmul.f32 %v57, %v59
    %v400 = vsel %vm68, %v397, 0
    %v403 = vsel %vm68, %v398, 0
    %405 = vmatprep.subr.mxu0 0.0
    %406 = vmatpush1.msra.mxu0 %v60
    %407 = vmatprep.subr.mxu0 0.0
    %408 = vmatpush1.msra.mxu0 %v61
    %409 = vmatprep.subr.mxu0 0.0
    %410 = vmatpush1.msra.mxu0 %v62
    %411 = vmatprep.subr.mxu0 0.0
    %412 = vmatpush1.msra.mxu0 %v63
    %413 = vmatprep.subr.mxu0 0.0
    %414 = vmatpush1.msra.mxu0 %v64
    %415 = vmatprep.subr.mxu0 0.0
    %416 = vmatpush1.msra.mxu0 %v65
    %417 = vmatprep.subr.mxu0 0.0
    %418 = vmatpush1.msra.mxu0 %v66
    %419 = vmatprep.subr.mxu0 0.0
    %420 = vmatpush1.msra.mxu0 %v67
    %421 = vmatprep.subr.mxu0 0.0
    %422 = vmatpush1.msra.mxu0 0.0
    %423 = vmatprep.subr.mxu0 0.0
    %424 = vmatpush1.msra.mxu0 0.0
    %425 = vmatprep.subr.mxu0 0.0
    %426 = vmatpush1.msra.mxu0 0.0
    %427 = vmatprep.subr.mxu0 0.0
    %428 = vmatpush1.msra.mxu0 0.0
    %429 = vmatprep.subr.mxu0 0.0
    %430 = vmatpush1.msra.mxu0 0.0
    %431 = vmatprep.subr.mxu0 0.0
    %432 = vmatpush1.msra.mxu0 0.0
    %433 = vmatprep.subr.mxu0 0.0
    %434 = vmatpush1.msra.mxu0 0.0
    %435 = vmatprep.subr.mxu0 0.0
    %436 = vmatpush1.msra.mxu0 0.0
    %437 = vmatprep.subr.mxu0 0.0
    %438 = vmatpush1.msra.mxu0 0.0
    %439 = vmatprep.subr.mxu0 0.0
    %440 = vmatpush1.msra.mxu0 0.0
    %441 = vmatprep.subr.mxu0 0.0
    %442 = vmatpush1.msra.mxu0 0.0
    %443 = vmatprep.subr.mxu0 0.0
    %444 = vmatpush1.msra.mxu0 0.0
    %445 = vmatprep.subr.mxu0 0.0
    %446 = vmatpush1.msra.mxu0 0.0
    %447 = vmatprep.subr.mxu0 0.0
    %448 = vmatpush1.msra.mxu0 0.0
    %449 = vmatprep.subr.mxu0 0.0
    %450 = vmatpush1.msra.mxu0 0.0
    %451 = vmatprep.subr.mxu0 0.0
    %452 = vmatpush1.msra.mxu0 0.0
    %453 = vmatprep.subr.mxu0 0.0
    %454 = vmatpush1.msra.mxu0 0.0
    %455 = vmatprep.subr.mxu0 0.0
    %456 = vmatpush1.msra.mxu0 0.0
    %457 = vmatprep.subr.mxu0 0.0
    %458 = vmatpush1.msra.mxu0 0.0
    %459 = vmatprep.subr.mxu0 0.0
    %460 = vmatpush1.msra.mxu0 0.0
    %461 = vmatprep.subr.mxu0 0.0
    %462 = vmatpush1.msra.mxu0 0.0
    %463 = vmatprep.subr.mxu0 0.0
    %464 = vmatpush1.msra.mxu0 0.0
    %465 = vmatprep.subr.mxu0 0.0
    %466 = vmatpush1.msra.mxu0 0.0
    %467 = vmatprep.subr.mxu0 0.0
    %468 = vmatpush1.msra.mxu0 0.0
    %469 = vmatprep.mubr.f32.mxu0 0.0
    %470 = vmatmul.mubr.f32.gmra.mrb[0].mxu0 %v400
    %v471 = vpop.f32.mrb[0].mxu0
    %v472 = vadd.f32 0.0, %v471
    %v473 = vpop.f32.mrb[0].mxu0
    %474 = vmatprep.mubr.f32.mxu0 0.0
    %475 = vmatmul.mubr.f32.gmra.mrb[0].mxu0 %v403
    %v476 = vpop.f32.mrb[0].mxu0
    %v477 = vadd.f32 0.0, %v476
    %v478 = vpop.f32.mrb[0].mxu0
    %479 = vdwg.mxu0
    %v480 = vmul.f32 %v142, 0.1
    %v481 = vmul.f32 %v147, 0.1
    %v482 = vmul.f32 %v223, 0.1
    %v483 = vmul.f32 %v228, 0.1
    %v484 = vmul.f32 %v472, 0.1
    %v485 = vmul.f32 %v477, 0.1
    %v486 = vmul.f32 %v480, %v482
    %v487 = vmul.f32 %v481, %v483
    %v488 = vsub.f32 %v484, %v486
    %v489 = vsub.f32 %v485, %v487
    %v490 = vmul.f32 %v480, 10.0
    %v491 = vmul.f32 %v481, 10.0
    %v492 = vmul.f32 %v490, %v480
    %v493 = vmul.f32 %v491, %v481
    %v494 = vsub.f32 %v306, %v492
    %v495 = vsub.f32 %v311, %v493
    %v496 = vmul.f32 %v494, 0.11111111
    %v497 = vmul.f32 %v495, 0.11111111
    %v498 = vmul.f32 %v482, 10.0
    %v499 = vmul.f32 %v483, 10.0
    %v500 = vmul.f32 %v498, %v482
    %v501 = vmul.f32 %v499, %v483
    %v502 = vsub.f32 %v389, %v500
    %v503 = vsub.f32 %v394, %v501
    %v504 = vmul.f32 %v502, 0.11111111
    %v505 = vmul.f32 %v503, 0.11111111
    %v506 = vmul.f32 %v496, %v504
    %v507 = vmul.f32 %v497, %v505
    %v508 = vrsqrt.pop %v506
    %v509 = vrsqrt.pop %v507
    %v510 = vmul.f32 %v488, %v508
    %v511 = vmul.f32 %v489, %v509
    %512 = vst [vmem:[#allocation8] sm:$0xff] %v510
    %513 = vst [vmem:[#allocation8 + $0x8] sm:$0xff] %v511
    // Predicated region
    $region26: #{tpu_custom_call.1} parent=1 // pred_check
      _
    $region27: #{tpu_custom_call.1} parent=1 // pred_check_branch
      %515 = sbr.rel (0) target = $region29
    $region28: #{tpu_custom_call.1} parent=1 // pred_region
      %s517 = ssub.s32 256, 256
      %518 = vsyncadd [#allocation4], %s517
      %s519 = sshll.u32 [#allocation8], 4
      %s520 = int_to_ptr.vmem [resolvable:$true] %s519
      %525 = dma.vmem_to_hbm [thread:$0]  %s520, 256, %s3, [#allocation4], 128, 128, 8
    $region29: #{tpu_custom_call.1} parent=1 // pred_fallthru
      _
    // Predicated region
    $region30: #{tpu_custom_call.1} parent=1 // pred_check
      _
    $region31: #{tpu_custom_call.1} parent=1 // pred_check_branch
      %527 = sbr.rel (0) target = $region33
    $region32: #{tpu_custom_call.1} parent=1 // pred_region
      %528 = dma.done [#allocation4], 256
    $region33: #{tpu_custom_call.1} parent=1 // pred_fallthru
      _
    %529 = vsyncpa [#allocation3], 1
    %530 = vsyncpa [#allocation6], 1
    %531 = vsyncpa [#allocation4], 1

</llo_original>
